<compile_context>
chip_gen: v6e
topology: v6e:2x2x1
jax: 0.10.0
libtpu: 0.0.40
codegen_flags: <defaults>
</compile_context>

<pallas_src>
import jax
import jax.numpy as jnp
from jax.experimental import pallas as pl
from jax.experimental.pallas import tpu as pltpu

_LN_EPS = 1e-5


# ---------------------------------------------------------------------------
# Tiling helpers.
# ---------------------------------------------------------------------------
def _largest_divisor_leq(n, cap):
    for d in range(min(n, cap), 0, -1):
        if n % d == 0:
            return d
    return 1


def _choose_batch_tile(b):
    # Two sublane-aligned batch tiles when possible so the "parallel" batch
    # grid axis can be sharded across v7x's two TensorCores.
    if b >= 16 and b % 16 == 0:
        return b // 2
    return b


def _stage2_vmem_bytes(t_blk, tb, h):
    h3 = 3 * h
    f32, bf16 = 4, 2
    return (2 * t_blk * tb * h3 * f32          # xr blocks (double-buffered)
            + 2 * h * h3 * bf16                # resident U^T
            + 2 * (3 * h3 + 2 * h) * f32       # biases / LN affine params
            + 2 * tb * (2 * h + h3) * f32      # cell_state, h0, I0
            + 2 * t_blk * tb * (h + h3) * f32  # out_h / out_i blocks
            + tb * (h + h3) * f32)             # h / I VMEM carries


# ---------------------------------------------------------------------------
# Kernel 1: batched input projection + LayerNorm_ih, row-tiled over T*B.
# ---------------------------------------------------------------------------
def input_proj_kernel(x_ref,      # (TILE_R, D)  bf16
                      wt_ref,     # (D, 3H)      bf16 (resident)
                      bw_ref,     # (1, 3H)      f32
                      g_ih_ref,   # (1, 3H)      f32
                      b_ih_ref,   # (1, 3H)      f32
                      out_ref):   # (TILE_R, 3H) f32 = LN_ih(x W^T + b_w)
    acc = jnp.dot(x_ref[...], wt_ref[...],
                  preferred_element_type=jnp.float32) + bw_ref[...]
    mean = jnp.mean(acc, axis=-1, keepdims=True)
    msq = jnp.mean(acc * acc, axis=-1, keepdims=True)
    inv_std = jax.lax.rsqrt(msq - mean * mean + _LN_EPS)
    out_ref[...] = (acc - mean) * inv_std * g_ih_ref[...] + b_ih_ref[...]


# ---------------------------------------------------------------------------
# Kernel 2: fused recurrence. grid = (batch tiles ["parallel"], time blocks
# ["arbitrary"]); T_BLK timesteps per grid step via an unrolled fori_loop.
# ---------------------------------------------------------------------------
def gru_recurrent_kernel(xr_ref,                    # (T_BLK, TB, 3H) f32
                         ut_ref,                    # (H, 3H) bf16 (resident)
                         bu_ref,                    # (1, 3H) f32
                         g_hh_ref, b_hh_ref,        # (1, 3H) f32
                         g_gate_ref, b_gate_ref,    # (1, H)  f32
                         cell_ref,                  # (TB, H) f32 (fixed)
                         h0_ref,                    # (TB, H) f32
                         i0_ref,                    # (TB, 3H) f32
                         alpha_ref, alpham1_ref,    # (1, 1) f32 in SMEM
                         out_h_ref,                 # (T_BLK, TB, H)  f32
                         out_i_ref,                 # (T_BLK, TB, 3H) f32
                         h_scr,                     # VMEM (TB, H)  carried h
                         i_scr):                    # VMEM (TB, 3H) carried I
    H = out_h_ref.shape[-1]
    H2 = 2 * H
    H3 = 3 * H
    t_blk = xr_ref.shape[0]

    @pl.when(pl.program_id(1) == 0)          # start of this batch tile's sweep
    def _init():
        h_scr[...] = h0_ref[...]
        i_scr[...] = i0_ref[...]

    alpha = alpha_ref[0, 0]
    alpham1 = alpham1_ref[0, 0]
    inv_3h = 1.0 / H3
    inv_h = 1.0 / H

    def step(tt, carry):
        # Recurrent projection: ONE fused (TB,H)x(H,3H) bf16 MXU matmul,
        # then LayerNorm_hh over the full 3H with a single lane reduction.
        hmat = jnp.dot(h_scr[...].astype(jnp.bfloat16), ut_ref[...],
                       preferred_element_type=jnp.float32) + bu_ref[...]
        mean = jnp.sum(hmat, axis=-1, keepdims=True) * inv_3h
        msq = jnp.sum(hmat * hmat, axis=-1, keepdims=True) * inv_3h
        h_ln = ((hmat - mean) * jax.lax.rsqrt(msq - mean * mean + _LN_EPS)
                * g_hh_ref[...] + b_hh_ref[...])

        x_t = xr_ref[tt]                      # (TB, 3H) LN_ih path, this step
        i_prev = i_scr[...]

        # u / r gates (static lane slices; free when H % 128 == 0).
        i_ur = alpha * i_prev[:, :H2] - alpham1 * (x_t[:, :H2] + h_ln[:, :H2])
        u = jax.nn.sigmoid(i_ur[:, :H])
        r = jax.nn.sigmoid(i_ur[:, H:H2])
        # c gate uses the r-modulated recurrent contribution.
        i_c = alpha * i_prev[:, H2:] - alpham1 * (x_t[:, H2:] + r * h_ln[:, H2:])

        # Retire I immediately (bounds live ranges; full-width stores).
        i_new = jnp.concatenate([i_ur, i_c], axis=-1)
        i_scr[...] = i_new
        out_i_ref[tt] = i_new

        # Gate LayerNorm -> new hidden.
        z = jnp.tanh(i_c)
        pre = u * cell_ref[...] + (1.0 - u) * z
        gm = jnp.sum(pre, axis=-1, keepdims=True) * inv_h
        gq = jnp.sum(pre * pre, axis=-1, keepdims=True) * inv_h
        h_new = ((pre - gm) * jax.lax.rsqrt(gq - gm * gm + _LN_EPS)
                 * g_gate_ref[...] + b_gate_ref[...])
        h_scr[...] = h_new
        out_h_ref[tt] = h_new
        return carry

    jax.lax.fori_loop(0, t_blk, step, 0, unroll=True)


# ---------------------------------------------------------------------------
# One-time parameter preparation (hoisted out of the per-call path).
# ---------------------------------------------------------------------------
def prepare_params(params):
    W = jnp.asarray(params["W"], jnp.float32)          # (3H, D)
    U = jnp.asarray(params["U"], jnp.float32)          # (3H, H)
    H = U.shape[1]
    f32 = jnp.float32
    return {
        "Wt": W.T.astype(jnp.bfloat16),                # (D, 3H)
        "Ut": U.T.astype(jnp.bfloat16),                # (H, 3H)
        "b_w": jnp.asarray(params["b_w"], f32).reshape(1, 3 * H),
        "b_u": jnp.asarray(params["b_u"], f32).reshape(1, 3 * H),
        "g_ih": jnp.asarray(params["g_ih"], f32).reshape(1, 3 * H),
        "b_ih": jnp.asarray(params["b_ih"], f32).reshape(1, 3 * H),
        "g_hh": jnp.asarray(params["g_hh"], f32).reshape(1, 3 * H),
        "b_hh": jnp.asarray(params["b_hh"], f32).reshape(1, 3 * H),
        "g_gate": jnp.asarray(params["g_gate"], f32).reshape(1, H),
        "b_gate": jnp.asarray(params["b_gate"], f32).reshape(1, H),
        "alpha": jnp.asarray(params["alpha"], f32).reshape(1, 1),
        "alpham1": jnp.asarray(params["alpham1"], f32).reshape(1, 1),
    }


# ---------------------------------------------------------------------------
# Wrappers.
# ---------------------------------------------------------------------------
def script_gru_sequence(xs, state, prepared):
    """xs: (T, B, D). state = (hidden (B,H), cell_state (B,H), I (B,3H)).
    Returns (hs (T,B,H), Is (T,B,3H)): ScriptGRU.forward applied step-by-step
    with hidden/I threaded and cell_state held fixed."""
    hidden, cell, I = state
    T, B, D = xs.shape
    H = hidden.shape[-1]
    H3 = 3 * H

    # ---- Stage 1: row-tiled input projection + LN_ih for all timesteps ----
    R = T * B
    tile_r = R if R <= 512 else 512                  # multiple of 8 or full
    x_flat = xs.reshape(R, D).astype(jnp.bfloat16)   # free row-major reshape
    xr = pl.pallas_call(
        input_proj_kernel,
        out_shape=jax.ShapeDtypeStruct((R, H3), jnp.float32),
        grid=(pl.cdiv(R, tile_r),),
        in_specs=[
            pl.BlockSpec((tile_r, D), lambda r: (r, 0)),   # x rows (pipelined)
            pl.BlockSpec((D, H3), lambda r: (0, 0)),       # Wt (resident)
            pl.BlockSpec((1, H3), lambda r: (0, 0)),       # b_w
            pl.BlockSpec((1, H3), lambda r: (0, 0)),       # g_ih
            pl.BlockSpec((1, H3), lambda r: (0, 0)),       # b_ih
        ],
        out_specs=pl.BlockSpec((tile_r, H3), lambda r: (r, 0)),
        compiler_params=pltpu.CompilerParams(
            dimension_semantics=("parallel",)),
    )(x_flat, prepared["Wt"], prepared["b_w"], prepared["g_ih"],
      prepared["b_ih"])
    xr = xr.reshape(T, B, H3)                        # free reshape, no transpose

    # ---- Stage 2: fused recurrence ----------------------------------------
    t_blk = _largest_divisor_leq(T, 4)               # timesteps per grid step
    tb = _choose_batch_tile(B)                       # batch tile ("parallel")
    nb, nt = B // tb, T // t_blk

    vmem_limit = int(min(max(2 * _stage2_vmem_bytes(t_blk, tb, H) + (4 << 20),
                             16 << 20), 127 << 20))
    smem_spec = pl.BlockSpec(memory_space=pltpu.MemorySpace.SMEM)

    out_h, out_i = pl.pallas_call(
        gru_recurrent_kernel,
        out_shape=(jax.ShapeDtypeStruct((T, B, H), jnp.float32),
                   jax.ShapeDtypeStruct((T, B, H3), jnp.float32)),
        grid=(nb, nt),
        in_specs=[
            pl.BlockSpec((t_blk, tb, H3), lambda b, t: (t, b, 0)),  # xr
            pl.BlockSpec((H, H3), lambda b, t: (0, 0)),             # Ut (resident)
            pl.BlockSpec((1, H3), lambda b, t: (0, 0)),             # b_u
            pl.BlockSpec((1, H3), lambda b, t: (0, 0)),             # g_hh
            pl.BlockSpec((1, H3), lambda b, t: (0, 0)),             # b_hh
            pl.BlockSpec((1, H), lambda b, t: (0, 0)),              # g_gate
            pl.BlockSpec((1, H), lambda b, t: (0, 0)),              # b_gate
            pl.BlockSpec((tb, H), lambda b, t: (b, 0)),             # cell_state
            pl.BlockSpec((tb, H), lambda b, t: (b, 0)),             # h0
            pl.BlockSpec((tb, H3), lambda b, t: (b, 0)),            # I0
            smem_spec,                                              # alpha
            smem_spec,                                              # alpham1
        ],
        out_specs=(
            pl.BlockSpec((t_blk, tb, H), lambda b, t: (t, b, 0)),   # hs
            pl.BlockSpec((t_blk, tb, H3), lambda b, t: (t, b, 0)),  # Is
        ),
        scratch_shapes=[pltpu.VMEM((tb, H), jnp.float32),
                        pltpu.VMEM((tb, H3), jnp.float32)],
        compiler_params=pltpu.CompilerParams(
            dimension_semantics=("parallel", "arbitrary"),
            vmem_limit_bytes=vmem_limit),
    )(xr, prepared["Ut"], prepared["b_u"], prepared["g_hh"], prepared["b_hh"],
      prepared["g_gate"], prepared["b_gate"],
      cell.astype(jnp.float32), hidden.astype(jnp.float32),
      I.astype(jnp.float32),
      prepared["alpha"], prepared["alpham1"])

    return out_h, out_i


def script_gru_forward(x, state, prepared):
    """Exact equivalent of ScriptGRU.forward(x, state): one step."""
    hs, Is = script_gru_sequence(x[None], state, prepared)
    return hs[0], Is[0]


# ---------------------------------------------------------------------------
# Pure-JAX references (for verification).
# ---------------------------------------------------------------------------
def _ln_ref(x, gamma, beta, eps=_LN_EPS):
    mean = jnp.mean(x, axis=-1, keepdims=True)
    var = jnp.mean(x * x, axis=-1, keepdims=True) - mean * mean
    return (x - mean) * jax.lax.rsqrt(var + eps) * gamma + beta


def script_gru_step_reference(x, state, params, mm_dtype=jnp.float32):
    hidden, cell, I = state
    alpha, alpham1 = params["alpha"], params["alpham1"]

    def mm(a, b):
        return jnp.dot(a.astype(mm_dtype), b.astype(mm_dtype),
                       preferred_element_type=jnp.float32)

    x_results = _ln_ref(mm(x, params["W"].T) + params["b_w"],
                        params["g_ih"], params["b_ih"])
    h_results = _ln_ref(mm(hidden, params["U"].T) + params["b_u"],
                        params["g_hh"], params["b_hh"])
    i_u0, i_r0, i_c0 = jnp.split(I, 3, axis=-1)
    x_u, x_r, x_c = jnp.split(x_results, 3, axis=-1)
    h_u, h_r, h_c = jnp.split(h_results, 3, axis=-1)
    i_r = alpha * i_r0 - alpham1 * (x_r + h_r)
    r = jax.nn.sigmoid(i_r)
    i_u = alpha * i_u0 - alpham1 * (x_u + h_u)
    u = jax.nn.sigmoid(i_u)
    i_c = alpha * i_c0 - alpham1 * (x_c + r * h_c)
    z = jnp.tanh(i_c)
    I_new = jnp.concatenate((i_u, i_r, i_c), axis=-1)
    h_new = _ln_ref(u * cell + (1.0 - u) * z, params["g_gate"], params["b_gate"])
    return h_new, I_new


def script_gru_sequence_reference(xs, state, params, mm_dtype=jnp.float32):
    hidden, cell, I = state
    hs, Is = [], []
    for t in range(xs.shape[0]):
        hidden, I = script_gru_step_reference(xs[t], (hidden, cell, I),
                                              params, mm_dtype)
        hs.append(hidden)
        Is.append(I)
    return jnp.stack(hs), jnp.stack(Is)


def _rel_err(a, b):
    return float(jnp.linalg.norm(a - b) / (jnp.linalg.norm(b) + 1e-12))


# ---------------------------------------------------------------------------
if __name__ == "__main__":
    # B=16 exercises two batch tiles (the "parallel" axis); T=8 with T_BLK=4
    # exercises both the in-kernel time loop and the cross-grid-step carry.
    B, D, H, T = 16, 32, 32, 8

    key = jax.random.PRNGKey(0)
    ks = jax.random.split(key, 8)

    base_params = {
        "W": 0.1 * jax.random.normal(ks[0], (3 * H, D), jnp.float32),
        "U": 0.1 * jax.random.normal(ks[1], (3 * H, H), jnp.float32),
        "b_w": 0.1 * jax.random.normal(ks[2], (3 * H,), jnp.float32),
        "b_u": 0.1 * jax.random.normal(ks[3], (3 * H,), jnp.float32),
        "g_ih": jnp.ones((3 * H,), jnp.float32),
        "b_ih": jnp.zeros((3 * H,), jnp.float32),
        "g_hh": jnp.ones((3 * H,), jnp.float32),
        "b_hh": jnp.zeros((3 * H,), jnp.float32),
        "g_gate": jnp.ones((H,), jnp.float32),
        "b_gate": jnp.zeros((H,), jnp.float32),
    }

    xs = jax.random.normal(ks[4], (T, B, D), jnp.float32)
    hidden = jax.random.normal(ks[5], (B, H), jnp.float32)
    cell_state = jax.random.normal(ks[6], (B, H), jnp.float32)
    I0 = jax.random.normal(ks[7], (B, 3 * H), jnp.float32)
    state = (hidden, cell_state, I0)

    # alpha = 0.0 is the module default; alpha = 0.3 exercises the I carry.
    for alpha in (0.0, 0.3):
        params = dict(base_params,
                      alpha=jnp.float32(alpha),
                      alpham1=jnp.float32(alpha - 1.0))
        prepared = prepare_params(params)   # one-time weight prep (hoisted)

        # -- single step (ScriptGRU.forward equivalent), bf16-matched ref ----
        h1, I1 = script_gru_forward(xs[0], state, prepared)
        h1, I1 = jax.block_until_ready((h1, I1))
        h1_ref, I1_ref = script_gru_step_reference(xs[0], state, params,
                                                   mm_dtype=jnp.bfloat16)
        assert jnp.allclose(h1, h1_ref, atol=2e-3, rtol=2e-3), "step hidden mismatch"
        assert jnp.allclose(I1, I1_ref, atol=2e-3, rtol=2e-3), "step I mismatch"

        # -- fused sequence vs per-step reference (bf16-matched) -------------
        hs, Is = script_gru_sequence(xs, state, prepared)
        hs, Is = jax.block_until_ready((hs, Is))
        hs_b, Is_b = script_gru_sequence_reference(xs, state, params,
                                                   mm_dtype=jnp.bfloat16)
        assert jnp.allclose(hs, hs_b, atol=2e-3, rtol=2e-3), "seq hidden mismatch"
        assert jnp.allclose(Is, Is_b, atol=2e-3, rtol=2e-3), "seq I mismatch"

        # -- semantic sanity vs full-f32 reference (loose: bf16 MXU ops) ------
        hs_f, Is_f = script_gru_sequence_reference(xs, state, params,
                                                   mm_dtype=jnp.float32)
        assert _rel_err(hs, hs_f) < 5e-2, "seq hidden deviates too far from f32 ref"
        assert _rel_err(Is, Is_f) < 5e-2, "seq I deviates too far from f32 ref"

    print("KERNEL_OK")
</pallas_src>

<mosaic_0001>
module attributes {stable_mosaic.version = 11 : i64} {
  func.func @input_proj_kernel(%arg0: i32, %arg1: memref<16x32xbf16, #tpu.memory_space<vmem>>, %arg2: memref<32x96xbf16, #tpu.memory_space<vmem>>, %arg3: memref<1x96xf32, #tpu.memory_space<vmem>>, %arg4: memref<1x96xf32, #tpu.memory_space<vmem>>, %arg5: memref<1x96xf32, #tpu.memory_space<vmem>>, %arg6: memref<16x96xf32, #tpu.memory_space<vmem>>) attributes {dimension_semantics = [#tpu.dimension_semantics<parallel>], iteration_bounds = array<i64: 1>, scalar_prefetch = 0 : i64, scratch_operands = 0 : i64, tpu.core_type = #tpu.core_type<tc>, window_params = [{transform_indices = @transform_0, window_bounds = array<i64: 16, 32>}, {pipeline_mode = #tpu.pipeline_mode<synchronous>, transform_indices = @transform_1, window_bounds = array<i64: 32, 96>}, {pipeline_mode = #tpu.pipeline_mode<synchronous>, transform_indices = @transform_2, window_bounds = array<i64: 1, 96>}, {pipeline_mode = #tpu.pipeline_mode<synchronous>, transform_indices = @transform_3, window_bounds = array<i64: 1, 96>}, {pipeline_mode = #tpu.pipeline_mode<synchronous>, transform_indices = @transform_4, window_bounds = array<i64: 1, 96>}, {transform_indices = @transform_5, window_bounds = array<i64: 16, 96>}]} {
    %c0 = arith.constant 0 : index
    %c0_0 = arith.constant 0 : index
    %0 = vector.load %arg1[%c0, %c0_0] : memref<16x32xbf16, #tpu.memory_space<vmem>>, vector<16x32xbf16>
    %c0_1 = arith.constant 0 : index
    %c0_2 = arith.constant 0 : index
    %1 = vector.load %arg2[%c0_1, %c0_2] : memref<32x96xbf16, #tpu.memory_space<vmem>>, vector<32x96xbf16>
    %cst = arith.constant dense<0.000000e+00> : vector<16x96xf32>
    %2 = tpu.matmul %0, %1, %cst {dimension_numbers = #tpu.dot_dimension_numbers<[1], [0], [0], [1], [0, 0, 1, 1], [], []>} : vector<16x32xbf16>, vector<32x96xbf16>, vector<16x96xf32> -> vector<16x96xf32>
    %c0_3 = arith.constant 0 : index
    %c0_4 = arith.constant 0 : index
    %3 = vector.load %arg3[%c0_3, %c0_4] : memref<1x96xf32, #tpu.memory_space<vmem>>, vector<1x96xf32>
    %4 = vector.broadcast %3 : vector<1x96xf32> to vector<16x96xf32>
    %5 = arith.addf %2, %4 : vector<16x96xf32>
    %cst_5 = arith.constant dense<0.000000e+00> : vector<16xf32>
    %6 = vector.multi_reduction <add>, %5, %cst_5 [1] : vector<16x96xf32> to vector<16xf32>
    %7 = vector.shape_cast %6 : vector<16xf32> to vector<16x1xf32>
    %cst_6 = arith.constant 9.600000e+01 : f32
    %8 = vector.broadcast %cst_6 : f32 to vector<16x1xf32>
    %9 = arith.divf %7, %8 : vector<16x1xf32>
    %10 = arith.mulf %5, %5 : vector<16x96xf32>
    %cst_7 = arith.constant dense<0.000000e+00> : vector<16xf32>
    %11 = vector.multi_reduction <add>, %10, %cst_7 [1] : vector<16x96xf32> to vector<16xf32>
    %12 = vector.shape_cast %11 : vector<16xf32> to vector<16x1xf32>
    %cst_8 = arith.constant 9.600000e+01 : f32
    %13 = vector.broadcast %cst_8 : f32 to vector<16x1xf32>
    %14 = arith.divf %12, %13 : vector<16x1xf32>
    %15 = arith.mulf %9, %9 : vector<16x1xf32>
    %16 = arith.subf %14, %15 : vector<16x1xf32>
    %cst_9 = arith.constant 9.99999974E-6 : f32
    %17 = vector.broadcast %cst_9 : f32 to vector<16x1xf32>
    %18 = arith.addf %16, %17 : vector<16x1xf32>
    %19 = math.rsqrt %18 : vector<16x1xf32>
    %20 = vector.broadcast %9 : vector<16x1xf32> to vector<16x96xf32>
    %21 = arith.subf %5, %20 : vector<16x96xf32>
    %22 = vector.broadcast %19 : vector<16x1xf32> to vector<16x96xf32>
    %23 = arith.mulf %21, %22 : vector<16x96xf32>
    %c0_10 = arith.constant 0 : index
    %c0_11 = arith.constant 0 : index
    %24 = vector.load %arg4[%c0_10, %c0_11] : memref<1x96xf32, #tpu.memory_space<vmem>>, vector<1x96xf32>
    %25 = vector.broadcast %24 : vector<1x96xf32> to vector<16x96xf32>
    %26 = arith.mulf %23, %25 : vector<16x96xf32>
    %c0_12 = arith.constant 0 : index
    %c0_13 = arith.constant 0 : index
    %27 = vector.load %arg5[%c0_12, %c0_13] : memref<1x96xf32, #tpu.memory_space<vmem>>, vector<1x96xf32>
    %28 = vector.broadcast %27 : vector<1x96xf32> to vector<16x96xf32>
    %29 = arith.addf %26, %28 : vector<16x96xf32>
    %c0_14 = arith.constant 0 : index
    %c0_15 = arith.constant 0 : index
    %30 = vector.load %arg6[%c0_14, %c0_15] : memref<16x96xf32, #tpu.memory_space<vmem>>, vector<16x96xf32>
    tpu.vector_store %arg6[%c0_14, %c0_15], %29 {strides = array<i32>} : memref<16x96xf32, #tpu.memory_space<vmem>>, vector<16x96xf32>,
    return
  }
  func.func @transform_0(%arg0: i32) -> (i32, i32) {
    %c0_i32 = arith.constant 0 : i32
    %c0_i32_0 = arith.constant 0 : i32
    return %arg0, %c0_i32 : i32, i32
  }
  func.func @transform_1(%arg0: i32) -> (i32, i32) {
    %c0_i32 = arith.constant 0 : i32
    %c0_i32_0 = arith.constant 0 : i32
    %c0_i32_1 = arith.constant 0 : i32
    return %c0_i32, %c0_i32_0 : i32, i32
  }
  func.func @transform_2(%arg0: i32) -> (i32, i32) {
    %c0_i32 = arith.constant 0 : i32
    %c0_i32_0 = arith.constant 0 : i32
    %c0_i32_1 = arith.constant 0 : i32
    return %c0_i32, %c0_i32_0 : i32, i32
  }
  func.func @transform_3(%arg0: i32) -> (i32, i32) {
    %c0_i32 = arith.constant 0 : i32
    %c0_i32_0 = arith.constant 0 : i32
    %c0_i32_1 = arith.constant 0 : i32
    return %c0_i32, %c0_i32_0 : i32, i32
  }
  func.func @transform_4(%arg0: i32) -> (i32, i32) {
    %c0_i32 = arith.constant 0 : i32
    %c0_i32_0 = arith.constant 0 : i32
    %c0_i32_1 = arith.constant 0 : i32
    return %c0_i32, %c0_i32_0 : i32, i32
  }
  func.func @transform_5(%arg0: i32) -> (i32, i32) {
    %c0_i32 = arith.constant 0 : i32
    %c0_i32_0 = arith.constant 0 : i32
    return %arg0, %c0_i32 : i32, i32
  }
}

</mosaic_0001>

<llo_original>
// kernel: tpu_custom_call.1
$region0: #{tpu_custom_call.1}
  #allocation0 [shape = 'u32[]', space=smem, size = 0x4, offset = 0x4, fixed_abs, tag = 'smem constant byte address 0x4 - core index']
  #allocation1 [shape = 'u32[144,128]{1,0:T(1,128)}', space=vmem, size = 0x12000, scoped, tag = 'internal scratch']
  %s0 = inlined_call_operand.hbm [shape: bf16[16,32], index: 0, kind: input, shape index: {}]
  %s1 = inlined_call_operand.hbm [shape: bf16[32,96], index: 1, kind: input, shape index: {}]
  %s2 = inlined_call_operand.vmem [shape: f32[1,96], index: 2, kind: input, shape index: {}]
  %s3 = inlined_call_operand.vmem [shape: f32[1,96], index: 3, kind: input, shape index: {}]
  %s4 = inlined_call_operand.vmem [shape: f32[1,96], index: 4, kind: input, shape index: {}]
  %s5 = inlined_call_operand.hbm [shape: f32[16,96], index: 5, kind: output, shape index: {}]
  %s6 = sld [smem:[#allocation0]]
  $region38: #{tpu_custom_call.1} parent=0
    _
  %s8 = ssub.s32 1, %s6
  %s9 = scalar_select 0, %s8, %s6
  $region1: #{tpu_custom_call.1} parent=0
    #allocation2 [shape = 'u8[4096]{0}', space=vmem, size = 0x1000, scoped, tag = 'input window, operand 0, single buffered']
    #allocation3 [shape = 's32[1]{0}', space=sflag, size = 0x4, scoped, tag = 'scoped memory for tpu_custom_call.1']
    #allocation4 [shape = 's32[1]{0}', space=sflag, size = 0x4, scoped, tag = 'scoped memory for tpu_custom_call.1']
    #allocation5 [shape = 'u8[8192]{0}', space=vmem, size = 0x2000, scoped, tag = 'input window, operand 1, single buffered']
    #allocation6 [shape = 's32[1]{0}', space=sflag, size = 0x4, scoped, tag = 'scoped memory for tpu_custom_call.1']
    #allocation7 [shape = 'u8[8192]{0}', space=vmem, size = 0x2000, scoped, tag = 'output window, operand 0, single buffered']
    %10 = vsyncpa [#allocation3], 0
    %11 = vsyncpa [#allocation6], 0
    %12 = vsyncpa [#allocation4], 0
    // Predicated region
    $region2: #{tpu_custom_call.1} parent=1 // pred_check
      _
    $region3: #{tpu_custom_call.1} parent=1 // pred_check_branch
      %14 = sbr.rel (0) target = $region5
    $region4: #{tpu_custom_call.1} parent=1 // pred_region
      %s16 = ssub.s32 128, 128
      %17 = vsyncadd [#allocation3], %s16
      %s18 = sshll.u32 [#allocation2], 4
      %s19 = int_to_ptr.vmem [resolvable:$true] %s18
      %24 = dma.hbm_to_vmem [thread:$0]  %s0, 128, %s19, [#allocation3], 64, 64, 4
    $region5: #{tpu_custom_call.1} parent=1 // pred_fallthru
      _
    // Predicated region
    $region6: #{tpu_custom_call.1} parent=1 // pred_check
      _
    $region7: #{tpu_custom_call.1} parent=1 // pred_check_branch
      %26 = sbr.rel (0) target = $region9
    $region8: #{tpu_custom_call.1} parent=1 // pred_region
      %s28 = ssub.s32 256, 256
      %29 = vsyncadd [#allocation6], %s28
      %s30 = sshll.u32 [#allocation5], 4
      %s31 = int_to_ptr.vmem [resolvable:$true] %s30
      %36 = dma.hbm_to_vmem [thread:$0]  %s1, 256, %s31, [#allocation6], 64, 64, 4
    $region9: #{tpu_custom_call.1} parent=1 // pred_fallthru
      _
    // Predicated region
    $region10: #{tpu_custom_call.1} parent=1 // pred_check
      _
    $region11: #{tpu_custom_call.1} parent=1 // pred_check_branch
      %38 = sbr.rel (0) target = $region13
    $region12: #{tpu_custom_call.1} parent=1 // pred_region
      _
    $region13: #{tpu_custom_call.1} parent=1 // pred_fallthru
      _
    // Predicated region
    $region14: #{tpu_custom_call.1} parent=1 // pred_check
      _
    $region15: #{tpu_custom_call.1} parent=1 // pred_check_branch
      %40 = sbr.rel (0) target = $region17
    $region16: #{tpu_custom_call.1} parent=1 // pred_region
      _
    $region17: #{tpu_custom_call.1} parent=1 // pred_fallthru
      _
    // Predicated region
    $region18: #{tpu_custom_call.1} parent=1 // pred_check
      _
    $region19: #{tpu_custom_call.1} parent=1 // pred_check_branch
      %42 = sbr.rel (0) target = $region21
    $region20: #{tpu_custom_call.1} parent=1 // pred_region
      _
    $region21: #{tpu_custom_call.1} parent=1 // pred_fallthru
      _
    // Predicated region
    $region22: #{tpu_custom_call.1} parent=1 // pred_check
      _
    $region23: #{tpu_custom_call.1} parent=1 // pred_check_branch
      %44 = sbr.rel (0) target = $region25
    $region24: #{tpu_custom_call.1} parent=1 // pred_region
      %45 = dma.done [#allocation3], 128
    $region25: #{tpu_custom_call.1} parent=1 // pred_fallthru
      _
    // Predicated region
    $region26: #{tpu_custom_call.1} parent=1 // pred_check
      _
    $region27: #{tpu_custom_call.1} parent=1 // pred_check_branch
      %47 = sbr.rel (0) target = $region29
    $region28: #{tpu_custom_call.1} parent=1 // pred_region
      %48 = dma.done [#allocation6], 256
    $region29: #{tpu_custom_call.1} parent=1 // pred_fallthru
      _
    %v50 = vld [vmem:[#allocation2] sm:$0xf]
    %v51 = vld [vmem:[#allocation2 + $0x4] sm:$0xf]
    %v52 = vld [vmem:[#allocation5] sm:$0xf]
    %v53 = vld [vmem:[#allocation5 + $0x4] sm:$0xf]
    %v54 = vld [vmem:[#allocation5 + $0x8] sm:$0xf]
    %v55 = vld [vmem:[#allocation5 + $0xc] sm:$0xf]
    %v56 = vld [vmem:[%s2] sm:$0x1]
    %v58 = vlaneseq
    %v59 = vshrl.u32 %v58, 7
    %v60 = vsub.s32 0, %v59
    %v61 = vrot.slane %v56, %v60
    %v65 = vunpack.c.l.b16 %v50
    %v66 = vunpack.c.l.b16 %v51
    %v67 = vpack.c.b16 %v66, %v65
    %v72 = vunpack.c.l.b16 %v52
    %v73 = vunpack.c.l.b16 %v53
    %v74 = vunpack.c.l.b16 %v54
    %v75 = vunpack.c.l.b16 %v55
    %v76 = vpack.c.b16 %v73, %v72
    %v77 = vpack.c.b16 %v75, %v74
    %vm80 = vcmask 261120
    %v82 = vsel %vm80, %v67, 0
    %84 = vmatprep.subr.bf16.mxu0 0
    %85 = vmatpush1.bf16.msra.mxu0 0
    %86 = vmatprep.subr.bf16.mxu0 0
    %87 = vmatpush1.bf16.msra.mxu0 0
    %88 = vmatprep.subr.bf16.mxu0 0
    %89 = vmatpush1.bf16.msra.mxu0 0
    %90 = vmatprep.subr.bf16.mxu0 0
    %91 = vmatpush1.bf16.msra.mxu0 0
    %92 = vmatprep.subr.bf16.mxu0 0
    %93 = vmatpush1.bf16.msra.mxu0 0
    %94 = vmatprep.subr.bf16.mxu0 0
    %95 = vmatpush1.bf16.msra.mxu0 0
    %96 = vmatprep.subr.bf16.mxu0 0
    %97 = vmatpush1.bf16.msra.mxu0 %v77
    %98 = vmatprep.subr.bf16.mxu0 0
    %99 = vmatpush1.bf16.msra.mxu0 %v76
    %100 = vmatprep.subr.bf16.mxu0 0
    %101 = vmatpush2.bf16.msra.mxu0 0
    %102 = vmatprep.subr.bf16.mxu0 0
    %103 = vmatpush2.bf16.msra.mxu0 0
    %104 = vmatprep.subr.bf16.mxu0 0
    %105 = vmatpush2.bf16.msra.mxu0 0
    %106 = vmatprep.subr.bf16.mxu0 0
    %107 = vmatpush2.bf16.msra.mxu0 0
    %108 = vmatprep.subr.bf16.mxu0 0
    %109 = vmatpush2.bf16.msra.mxu0 0
    %110 = vmatprep.subr.bf16.mxu0 0
    %111 = vmatpush2.bf16.msra.mxu0 0
    %112 = vmatprep.subr.bf16.mxu0 0
    %113 = vmatpush2.bf16.msra.mxu0 0
    %114 = vmatprep.subr.bf16.mxu0 0
    %115 = vmatpush2.bf16.msra.mxu0 0
    %116 = vmatprep.mubr.bf16.mxu0 0
    %117 = vmatmul.mubr.bf16.gmra.mxu0 %v82
    %v118 = vpop.f32.mrf.mxu0
    %v119 = vadd.f32 %v61, %v118
    %v120 = vpop.f32.mrf.mxu0
    %v121 = vpop.f32.mrf.mxu0
    %v122 = vadd.f32 %v61, %v121
    %v123 = vpop.f32.mrf.mxu0
    %124 = vdwg.mxu0
    %vm125 = vcmask 785408
    %v126 = vsel %vm125, %v119, 0.0
    %127 = vadd.xlane.f32.xlu0 %v126
    %v128 = vpop.xlane.xlu0 %127
    %v129 = vsel %vm125, %v122, 0.0
    %130 = vadd.xlane.f32.xlu0 %v129
    %v131 = vpop.xlane.xlu0 %130
    %v132 = vrcp.pop 96.0
    %v133 = vmul.f32 %v128, %v132
    %v134 = vmul.f32 %v131, %v132
    %v135 = vmul.f32 %v119, %v119
    %v136 = vmul.f32 %v122, %v122
    %v137 = vsel %vm125, %v135, 0.0
    %138 = vadd.xlane.f32.xlu0 %v137
    %v139 = vpop.xlane.xlu0 %138
    %v140 = vsel %vm125, %v136, 0.0
    %141 = vadd.xlane.f32.xlu0 %v140
    %v142 = vpop.xlane.xlu0 %141
    %v143 = vmul.f32 %v139, %v132
    %v144 = vmul.f32 %v142, %v132
    %v145 = vmul.f32 %v133, %v133
    %v146 = vmul.f32 %v134, %v134
    %v147 = vsub.f32 %v143, %v145
    %v148 = vsub.f32 %v144, %v146
    %v149 = vadd.f32 %v147, 1e-05
    %v150 = vadd.f32 %v148, 1e-05
    %v151 = vrsqrt.pop %v149
    %v152 = vrsqrt.pop %v150
    %v153 = vsub.f32 %v119, %v133
    %v154 = vsub.f32 %v122, %v134
    %v155 = vmul.f32 %v153, %v151
    %v156 = vmul.f32 %v154, %v152
    %v157 = vld [vmem:[%s3] sm:$0x1]
    %v159 = vlaneseq
    %v160 = vshrl.u32 %v159, 7
    %v161 = vsub.s32 0, %v160
    %v162 = vrot.slane %v157, %v161
    %v164 = vmul.f32 %v155, %v162
    %v165 = vmul.f32 %v156, %v162
    %v166 = vld [vmem:[%s4] sm:$0x1]
    %v168 = vlaneseq
    %v169 = vshrl.u32 %v168, 7
    %v170 = vsub.s32 0, %v169
    %v171 = vrot.slane %v166, %v170
    %v173 = vadd.f32 %v164, %v171
    %v174 = vadd.f32 %v165, %v171
    %175 = vst.msk [vmem:[#allocation7] sm:$0xff] %vm125, %v173
    %176 = vst.msk [vmem:[#allocation7 + $0x8] sm:$0xff] %vm125, %v174
    // Predicated region
    $region30: #{tpu_custom_call.1} parent=1 // pred_check
      _
    $region31: #{tpu_custom_call.1} parent=1 // pred_check_branch
      %178 = sbr.rel (0) target = $region33
    $region32: #{tpu_custom_call.1} parent=1 // pred_region
      %s180 = ssub.s32 256, 256
      %181 = vsyncadd [#allocation4], %s180
      %s182 = sshll.u32 [#allocation7], 4
      %s183 = int_to_ptr.vmem [resolvable:$true] %s182
      %188 = dma.vmem_to_hbm [thread:$0]  %s183, 256, %s5, [#allocation4], 128, 128, 8
    $region33: #{tpu_custom_call.1} parent=1 // pred_fallthru
      _
    // Predicated region
    $region34: #{tpu_custom_call.1} parent=1 // pred_check
      _
    $region35: #{tpu_custom_call.1} parent=1 // pred_check_branch
      %190 = sbr.rel (0) target = $region37
    $region36: #{tpu_custom_call.1} parent=1 // pred_region
      %191 = dma.done [#allocation4], 256
    $region37: #{tpu_custom_call.1} parent=1 // pred_fallthru
      _
    %192 = vsyncpa [#allocation3], 1
    %193 = vsyncpa [#allocation6], 1
    %194 = vsyncpa [#allocation4], 1

</llo_original>
